<compile_context>
chip_gen: v6e
topology: v6e:2x2x1
jax: 0.10.0
libtpu: 0.0.40
codegen_flags: <defaults>
</compile_context>

<pallas_src>
import functools

import jax
import jax.numpy as jnp
from jax.experimental import pallas as pl
from jax.experimental.pallas import tpu as pltpu

MARGIN = 10.0
EPS = 1e-6  # torch.nn.functional.pairwise_distance default eps

# Target HBM payload (both input tiles) moved per grid step.
_TARGET_STEP_BYTES = 8 * 1024 * 1024


def _round_up(x, m):
    return ((x + m - 1) // m) * m


def _vmem_limit_bytes():
    """Generation-aware VMEM limit for this kernel."""
    cap = None
    try:
        cap = int(pltpu.get_tpu_info().vmem_capacity_bytes)
    except Exception:
        cap = None
    if not cap or cap <= 0:
        cap = 64 * 1024 * 1024  # conservative fallback: v7x physical VMEM
    # ~100 MiB on 128 MiB parts (v5e/v6e), <= 48 MiB on 64 MiB parts (v7x).
    return min(cap - 16 * 1024 * 1024, 100 * 1024 * 1024)


def _auto_tile_rows(D, in_itemsize, label_itemsize, sub, vmem_limit):
    d_pad = _round_up(D, 128)
    # Double-buffered VMEM footprint per tile row:
    #   2 inputs x 2 buffers x D_pad,
    #   label block lane-padded (TB,1)->(TB,128) x 2 buffers,
    #   f32 accumulator output block lane-padded to 128 x 2 buffers.
    bytes_per_row = (2 * 2 * d_pad * in_itemsize
                     + 2 * 128 * label_itemsize
                     + 2 * 128 * 4)
    budget = max(vmem_limit - 4 * 1024 * 1024, bytes_per_row * sub)
    max_rows_vmem = max(sub, budget // bytes_per_row)
    target_rows = max(sub, _TARGET_STEP_BYTES // max(2 * D * in_itemsize, 1))
    tb = max(sub, min(target_rows, max_rows_vmem))
    return (tb // sub) * sub


def _contrastive_kernel(x1_ref, x2_ref, label_ref, acc_ref, *,
                        margin, eps, batch, tile_rows, steps_per_slice,
                        needs_mask):
    j = pl.program_id(1)

    @pl.when(j == 0)
    def _init():
        acc_ref[...] = jnp.zeros_like(acc_ref)

    x1 = x1_ref[...].astype(jnp.float32)
    x2 = x2_ref[...].astype(jnp.float32)
    lbl = label_ref[...].astype(jnp.float32)

    # pairwise_distance: eps is added to the difference before the norm.
    diff = (x1 - x2) + eps
    sq = jnp.sum(diff * diff, axis=-1, keepdims=True)       # (TB, 1) == d^2
    d = jnp.sqrt(sq)
    hinge = jnp.maximum(margin - d, 0.0)
    per_row = lbl * sq + (1.0 - lbl) * (hinge * hinge)       # (TB, 1)

    if needs_mask:
        # Mask rows past the true batch size (ragged last tile / padded
        # clamped steps).  Select discards any NaN/Inf from padding rows.
        s = pl.program_id(0)
        row0 = (s * steps_per_slice + j) * tile_rows
        rows = row0 + jax.lax.broadcasted_iota(jnp.int32, per_row.shape, 0)
        per_row = jnp.where(rows < batch, per_row, 0.0)

    # Pure vector add into the resident accumulator block (no per-step scalar
    # reduce / SMEM crossing): the steady-state loop stays VPU + DMA only.
    acc_ref[...] += per_row


def contrastive_loss(output1, output2, label, margin=MARGIN, tile_rows=None):
    """output1, output2: (B, D); label: (B, 1) or (B,). Returns scalar f32 loss."""
    B, D = output1.shape
    assert output2.shape == (B, D)
    if label.ndim == 1:
        label = label[:, None]
    assert label.shape == (B, 1)

    in_itemsize = jnp.dtype(output1.dtype).itemsize
    label_itemsize = jnp.dtype(label.dtype).itemsize
    sub = 8 if in_itemsize >= 4 else 16  # sublane multiple (f32: 8, bf16: 16)

    vmem_limit = int(_vmem_limit_bytes())

    if tile_rows is None:
        TB = _auto_tile_rows(D, in_itemsize, label_itemsize, sub, vmem_limit)
    else:
        TB = int(tile_rows)
    TB = max(sub, (min(TB, _round_up(B, sub)) // sub) * sub)
    if TB >= B:
        TB = B  # single block == full array dims (always legal, no mask needed)

    total_steps = -(-B // TB)
    # Two parallel batch slices -> both v7x TensorCores stream HBM; on 1-TC
    # chips this is just a reordered sequential loop.
    n_slices = 2 if total_steps >= 2 else 1
    steps_per_slice = -(-total_steps // n_slices)
    padded_steps = n_slices * steps_per_slice
    needs_clamp = padded_steps > total_steps
    needs_mask = padded_steps * TB != B

    if needs_clamp:
        def blk(s, j):
            return (jnp.minimum(s * steps_per_slice + j, total_steps - 1), 0)
    else:
        def blk(s, j):
            return (s * steps_per_slice + j, 0)

    kernel = functools.partial(
        _contrastive_kernel,
        margin=float(margin), eps=EPS, batch=B, tile_rows=TB,
        steps_per_slice=steps_per_slice, needs_mask=needs_mask,
    )

    cost = pl.CostEstimate(
        flops=5 * B * D + 8 * B,
        transcendentals=B,  # one sqrt per row
        bytes_accessed=(2 * B * D * in_itemsize
                        + B * label_itemsize
                        + n_slices * TB * 4),
    )

    partials = pl.pallas_call(
        kernel,
        out_shape=jax.ShapeDtypeStruct((n_slices * TB, 1), jnp.float32),
        grid_spec=pltpu.PrefetchScalarGridSpec(
            num_scalar_prefetch=0,
            grid=(n_slices, steps_per_slice),
            in_specs=[
                pl.BlockSpec((TB, D), blk),
                pl.BlockSpec((TB, D), blk),
                pl.BlockSpec((TB, 1), blk),
            ],
            # Per-slice resident accumulator block (init at j==0, carried over
            # the "arbitrary" axis, written back once per slice).
            out_specs=pl.BlockSpec((TB, 1), lambda s, j: (s, 0)),
        ),
        compiler_params=pltpu.CompilerParams(
            dimension_semantics=("parallel", "arbitrary"),
            vmem_limit_bytes=vmem_limit,
        ),
        cost_estimate=cost,
    )(output1, output2, label)

    # Tiny cross-slice / cross-row reduction + mean in the wrapper.
    return jnp.sum(partials) * jnp.float32(1.0 / B)


def _reference(output1, output2, label, margin=MARGIN):
    diff = (output1.astype(jnp.float32) - output2.astype(jnp.float32)) + EPS
    d = jnp.sqrt(jnp.sum(diff * diff, axis=-1, keepdims=True))
    t1 = label * (d * d)
    t2 = (1.0 - label) * jnp.square(jnp.maximum(margin - d, 0.0))
    return jnp.mean(t1 + t2)


if __name__ == "__main__":
    key = jax.random.PRNGKey(0)
    k1, k2, k3 = jax.random.split(key, 3)

    # Small (batch, feature) embedding pair; B=50 is deliberately NOT a
    # multiple of 8 / the tile sizes used below.
    B, D = 50, 128
    output1 = jax.random.normal(k1, (B, D), dtype=jnp.float32)
    output2 = jax.random.normal(k2, (B, D), dtype=jnp.float32)
    label = jax.random.bernoulli(k3, p=0.5, shape=(B, 1)).astype(jnp.float32)

    ref = jax.block_until_ready(_reference(output1, output2, label))

    # 1) Auto tile sizing -> single full-array block path.
    loss = jax.block_until_ready(contrastive_loss(output1, output2, label))
    assert jnp.allclose(loss, ref, rtol=1e-5, atol=1e-5), (loss, ref)

    # 2) Forced small tiles: 4 batch tiles -> 2 parallel slices x 2 steps,
    #    ragged last tile exercises the masking path.
    loss = jax.block_until_ready(
        contrastive_loss(output1, output2, label, tile_rows=16))
    assert jnp.allclose(loss, ref, rtol=1e-5, atol=1e-5), (loss, ref)

    # 3) Odd tile count (3 tiles over 2 slices) -> clamped padded step path.
    B2 = 40
    o1b, o2b, lb = output1[:B2], output2[:B2], label[:B2]
    ref2 = jax.block_until_ready(_reference(o1b, o2b, lb))
    loss2 = jax.block_until_ready(contrastive_loss(o1b, o2b, lb, tile_rows=16))
    assert jnp.allclose(loss2, ref2, rtol=1e-5, atol=1e-5), (loss2, ref2)

    print("KERNEL_OK")
</pallas_src>

<mosaic_0001>
module attributes {stable_mosaic.version = 11 : i64} {
  func.func @_contrastive_kernel(%arg0: i32, %arg1: i32, %arg2: memref<50x128xf32, #tpu.memory_space<vmem>>, %arg3: memref<50x128xf32, #tpu.memory_space<vmem>>, %arg4: memref<50x1xf32, #tpu.memory_space<vmem>>, %arg5: memref<50x1xf32, #tpu.memory_space<vmem>>) attributes {dimension_semantics = [#tpu.dimension_semantics<parallel>, #tpu.dimension_semantics<arbitrary>], iteration_bounds = array<i64: 1, 1>, scalar_prefetch = 0 : i64, scratch_operands = 0 : i64, tpu.core_type = #tpu.core_type<tc>, window_params = [{transform_indices = @transform_0, window_bounds = array<i64: 50, 128>}, {transform_indices = @transform_1, window_bounds = array<i64: 50, 128>}, {transform_indices = @transform_2, window_bounds = array<i64: 50, 1>}, {transform_indices = @transform_3, window_bounds = array<i64: 50, 1>}]} {
    %c0_i32 = arith.constant 0 : i32
    %0 = arith.cmpi eq, %arg1, %c0_i32 : i32
    %1 = arith.extui %0 : i1 to i32
    %c0_i32_0 = arith.constant 0 : i32
    %2 = arith.cmpi ne, %1, %c0_i32_0 : i32
    scf.if %2 {
      %cst_14 = arith.constant 0.000000e+00 : f32
      %26 = vector.broadcast %cst_14 : f32 to vector<50x1xf32>
      %c0_15 = arith.constant 0 : index
      %c0_16 = arith.constant 0 : index
      %27 = vector.load %arg5[%c0_15, %c0_16] : memref<50x1xf32, #tpu.memory_space<vmem>>, vector<50x1xf32>
      tpu.vector_store %arg5[%c0_15, %c0_16], %26 {strides = array<i32>} : memref<50x1xf32, #tpu.memory_space<vmem>>, vector<50x1xf32>,
    } else {
    }
    %c0 = arith.constant 0 : index
    %c0_1 = arith.constant 0 : index
    %3 = vector.load %arg2[%c0, %c0_1] : memref<50x128xf32, #tpu.memory_space<vmem>>, vector<50x128xf32>
    %c0_2 = arith.constant 0 : index
    %c0_3 = arith.constant 0 : index
    %4 = vector.load %arg3[%c0_2, %c0_3] : memref<50x128xf32, #tpu.memory_space<vmem>>, vector<50x128xf32>
    %c0_4 = arith.constant 0 : index
    %c0_5 = arith.constant 0 : index
    %5 = vector.load %arg4[%c0_4, %c0_5] : memref<50x1xf32, #tpu.memory_space<vmem>>, vector<50x1xf32>
    %6 = arith.subf %3, %4 : vector<50x128xf32>
    %cst = arith.constant 9.99999997E-7 : f32
    %7 = vector.broadcast %cst : f32 to vector<50x128xf32>
    %8 = arith.addf %6, %7 : vector<50x128xf32>
    %9 = arith.mulf %8, %8 : vector<50x128xf32>
    %cst_6 = arith.constant dense<0.000000e+00> : vector<50xf32>
    %10 = vector.multi_reduction <add>, %9, %cst_6 [1] : vector<50x128xf32> to vector<50xf32>
    %11 = vector.shape_cast %10 : vector<50xf32> to vector<50x1xf32>
    %12 = math.sqrt %11 : vector<50x1xf32>
    %cst_7 = arith.constant 1.000000e+01 : f32
    %13 = vector.broadcast %cst_7 : f32 to vector<50x1xf32>
    %14 = arith.subf %13, %12 : vector<50x1xf32>
    %cst_8 = arith.constant 0.000000e+00 : f32
    %15 = vector.broadcast %cst_8 : f32 to vector<50x1xf32>
    %16 = arith.maximumf %14, %15 : vector<50x1xf32>
    %17 = arith.mulf %5, %11 : vector<50x1xf32>
    %cst_9 = arith.constant 1.000000e+00 : f32
    %18 = vector.broadcast %cst_9 : f32 to vector<50x1xf32>
    %19 = arith.subf %18, %5 : vector<50x1xf32>
    %20 = arith.mulf %16, %16 : vector<50x1xf32>
    %21 = arith.mulf %19, %20 : vector<50x1xf32>
    %22 = arith.addf %17, %21 : vector<50x1xf32>
    %c0_10 = arith.constant 0 : index
    %c0_11 = arith.constant 0 : index
    %23 = vector.load %arg5[%c0_10, %c0_11] : memref<50x1xf32, #tpu.memory_space<vmem>>, vector<50x1xf32>
    %24 = arith.addf %23, %22 : vector<50x1xf32>
    %c0_12 = arith.constant 0 : index
    %c0_13 = arith.constant 0 : index
    %25 = vector.load %arg5[%c0_12, %c0_13] : memref<50x1xf32, #tpu.memory_space<vmem>>, vector<50x1xf32>
    tpu.vector_store %arg5[%c0_12, %c0_13], %24 {strides = array<i32>} : memref<50x1xf32, #tpu.memory_space<vmem>>, vector<50x1xf32>,
    return
  }
  func.func @transform_0(%arg0: i32, %arg1: i32) -> (i32, i32) {
    %c1_i32 = arith.constant 1 : i32
    %0 = arith.muli %arg0, %c1_i32 : i32
    %1 = arith.addi %0, %arg1 : i32
    %c0_i32 = arith.constant 0 : i32
    %c0_i32_0 = arith.constant 0 : i32
    return %1, %c0_i32 : i32, i32
  }
  func.func @transform_1(%arg0: i32, %arg1: i32) -> (i32, i32) {
    %c1_i32 = arith.constant 1 : i32
    %0 = arith.muli %arg0, %c1_i32 : i32
    %1 = arith.addi %0, %arg1 : i32
    %c0_i32 = arith.constant 0 : i32
    %c0_i32_0 = arith.constant 0 : i32
    return %1, %c0_i32 : i32, i32
  }
  func.func @transform_2(%arg0: i32, %arg1: i32) -> (i32, i32) {
    %c1_i32 = arith.constant 1 : i32
    %0 = arith.muli %arg0, %c1_i32 : i32
    %1 = arith.addi %0, %arg1 : i32
    %c0_i32 = arith.constant 0 : i32
    %c0_i32_0 = arith.constant 0 : i32
    return %1, %c0_i32 : i32, i32
  }
  func.func @transform_3(%arg0: i32, %arg1: i32) -> (i32, i32) {
    %c0_i32 = arith.constant 0 : i32
    %c0_i32_0 = arith.constant 0 : i32
    return %arg0, %c0_i32 : i32, i32
  }
}

</mosaic_0001>

<llo_original>
// kernel: tpu_custom_call.1
$region0: #{tpu_custom_call.1}
  #allocation0 [shape = 'u32[]', space=smem, size = 0x4, offset = 0x4, fixed_abs, tag = 'smem constant byte address 0x4 - core index']
  #allocation1 [shape = 'u32[144,128]{1,0:T(1,128)}', space=vmem, size = 0x12000, scoped, tag = 'internal scratch']
  %s0 = inlined_call_operand.vmem [shape: f32[50,128], index: 0, kind: input, shape index: {}]
  %s1 = inlined_call_operand.hbm [shape: f32[50,128], index: 1, kind: input, shape index: {}]
  %s2 = inlined_call_operand.vmem [shape: f32[50,1], index: 2, kind: input, shape index: {}]
  %s3 = inlined_call_operand.vmem [shape: f32[50,1], index: 3, kind: output, shape index: {}]
  %s4 = sld [smem:[#allocation0]]
  $region30: #{tpu_custom_call.1} parent=0
    _
  %s6 = ssub.s32 1, %s4
  %s7 = scalar_select 0, %s6, %s4
  $region1: #{tpu_custom_call.1} parent=0
    #allocation2 [shape = 'u8[28672]{0}', space=vmem, size = 0x7000, scoped, tag = 'input window, operand 1, single buffered']
    #allocation3 [shape = 's32[1]{0}', space=sflag, size = 0x4, scoped, tag = 'scoped memory for tpu_custom_call.1']
    %8 = vsyncpa [#allocation3], 0
    // Predicated region
    $region2: #{tpu_custom_call.1} parent=1 // pred_check
      _
    $region3: #{tpu_custom_call.1} parent=1 // pred_check_branch
      %10 = sbr.rel (0) target = $region5
    $region4: #{tpu_custom_call.1} parent=1 // pred_region
      %s11 = sadd.s32 0, 0
      %s12 = smul.u32 7, %s11
      %p13 = scmp.lt.s32.totalorder %s12, 6
      %s14 = scalar_select %p13, %s12, 6
      %s15 = smul.addr %s14, 8
      %s16 = scalar_lea.vmem %s0, %s15
      %s17 = sadd.s32 0, 0
      %s18 = smul.u32 7, %s17
    $region5: #{tpu_custom_call.1} parent=1 // pred_fallthru
      _
    // Predicated region
    $region6: #{tpu_custom_call.1} parent=1 // pred_check
      _
    $region7: #{tpu_custom_call.1} parent=1 // pred_check_branch
      %20 = sbr.rel (0) target = $region9
    $region8: #{tpu_custom_call.1} parent=1 // pred_region
      %s21 = sadd.s32 0, 0
      %s22 = smul.u32 7, %s21
      %s24 = ssub.s32 896, 896
      %25 = vsyncadd [#allocation3], %s24
      %s26 = smul.addr %s22, 128
      %s27 = scalar_lea.hbm %s1, %s26
      %s28 = sshll.u32 [#allocation2], 4
      %s29 = int_to_ptr.vmem [resolvable:$true] %s28
      %34 = dma.hbm_to_vmem [thread:$0]  %s27, 896, %s29, [#allocation3], 128, 128, 8
    $region9: #{tpu_custom_call.1} parent=1 // pred_fallthru
      _
    // Predicated region
    $region10: #{tpu_custom_call.1} parent=1 // pred_check
      _
    $region11: #{tpu_custom_call.1} parent=1 // pred_check_branch
      %36 = sbr.rel (0) target = $region13
    $region12: #{tpu_custom_call.1} parent=1 // pred_region
      %s37 = sadd.s32 0, 0
      %s38 = smul.u32 7, %s37
      %p39 = scmp.lt.s32.totalorder %s38, 6
      %s40 = scalar_select %p39, %s38, 6
      %s41 = smul.addr %s40, 8
      %s42 = scalar_lea.vmem %s2, %s41
      %s43 = sadd.s32 0, 0
      %s44 = smul.u32 7, %s43
    $region13: #{tpu_custom_call.1} parent=1 // pred_fallthru
      _
    // Predicated region
    $region14: #{tpu_custom_call.1} parent=1 // pred_check
      _
    $region15: #{tpu_custom_call.1} parent=1 // pred_check_branch
      %46 = sbr.rel (0) target = $region17
    $region16: #{tpu_custom_call.1} parent=1 // pred_region
      %47 = dma.done [#allocation3], 896
    $region17: #{tpu_custom_call.1} parent=1 // pred_fallthru
      _
    %s48 = sadd.s32 0, 0
    %s49 = smul.u32 7, %s48
    %p50 = scmp.lt.s32.totalorder %s49, 6
    %s51 = scalar_select %p50, %s49, 6
    %s52 = smul.addr %s51, 8
    %s53 = scalar_lea.vmem %s0, %s52
    %s54 = sadd.s32 0, 0
    %s55 = smul.u32 7, %s54
    %p56 = scmp.lt.s32.totalorder %s55, 6
    %s57 = scalar_select %p56, %s55, 6
    %s58 = smul.addr %s57, 8
    %s59 = scalar_lea.vmem %s2, %s58
    %s60 = sadd.s32 0, 0
    %s61 = smul.u32 7, %s60
    %p62 = scmp.lt.s32.totalorder %s61, 6
    %s63 = scalar_select %p62, %s61, 6
    %s64 = smul.addr %s63, 8
    %s65 = scalar_lea.vmem %s0, %s64
    %s66 = sadd.s32 0, 0
    %s67 = smul.u32 7, %s66
    %s68 = sadd.s32 0, 0
    %s69 = smul.u32 7, %s68
    %s70 = sadd.s32 0, 0
    %s71 = smul.u32 7, %s70
    %p72 = scmp.lt.s32.totalorder %s71, 6
    %s73 = scalar_select %p72, %s71, 6
    %s74 = smul.addr %s73, 8
    %s75 = scalar_lea.vmem %s2, %s74
    %s76 = sadd.s32 0, 0
    %s77 = smul.u32 7, %s76
    %p78 = scmp.eq.s32.totalorder 0, 0
    // Predicated region
    $region18: #{tpu_custom_call.1} parent=1 // pred_check
      %p79 = pneg %p78
    $region19: #{tpu_custom_call.1} parent=1 // pred_check_branch
      %81 = sbr.rel (%p79) target = $region21
    $region20: #{tpu_custom_call.1} parent=1 // pred_region
      %vm82 = vcmask 7168
      %83 = vst.msk [vmem:[%s3] sm:$0xff] %vm82, 0.0
      %84 = vst.msk [vmem:[%s3 + $0x8] sm:$0xff] %vm82, 0.0
      %85 = vst.msk [vmem:[%s3 + $0x10] sm:$0xff] %vm82, 0.0
      %86 = vst.msk [vmem:[%s3 + $0x18] sm:$0xff] %vm82, 0.0
      %87 = vst.msk [vmem:[%s3 + $0x20] sm:$0xff] %vm82, 0.0
      %88 = vst.msk [vmem:[%s3 + $0x28] sm:$0xff] %vm82, 0.0
      %vm89 = vcmask 1024
      %90 = vst.msk [vmem:[%s3 + $0x30] sm:$0x3] %vm89, 0.0
    $region21: #{tpu_custom_call.1} parent=1 // pred_fallthru
      _
    %v91 = vld [vmem:[%s65] sm:$0xff]
    %v92 = vld [vmem:[%s65 + $0x8] sm:$0xff]
    %v93 = vld [vmem:[%s65 + $0x10] sm:$0xff]
    %v94 = vld [vmem:[%s65 + $0x18] sm:$0xff]
    %v95 = vld [vmem:[%s65 + $0x20] sm:$0xff]
    %v96 = vld [vmem:[%s65 + $0x28] sm:$0xff]
    %v97 = vld [vmem:[%s65 + $0x30] sm:$0x3]
    %v98 = vld [vmem:[#allocation2] sm:$0xff]
    %v99 = vld [vmem:[#allocation2 + $0x8] sm:$0xff]
    %v100 = vld [vmem:[#allocation2 + $0x10] sm:$0xff]
    %v101 = vld [vmem:[#allocation2 + $0x18] sm:$0xff]
    %v102 = vld [vmem:[#allocation2 + $0x20] sm:$0xff]
    %v103 = vld [vmem:[#allocation2 + $0x28] sm:$0xff]
    %v104 = vld [vmem:[#allocation2 + $0x30] sm:$0x3]
    %v105 = vld [vmem:[%s75] sm:$0xff]
    %v106 = vld [vmem:[%s75 + $0x8] sm:$0xff]
    %v107 = vld [vmem:[%s75 + $0x10] sm:$0xff]
    %v108 = vld [vmem:[%s75 + $0x18] sm:$0xff]
    %v109 = vld [vmem:[%s75 + $0x20] sm:$0xff]
    %v110 = vld [vmem:[%s75 + $0x28] sm:$0xff]
    %v111 = vld [vmem:[%s75 + $0x30] sm:$0x3]
    %v112 = vsub.f32 %v91, %v98
    %v113 = vsub.f32 %v92, %v99
    %v114 = vsub.f32 %v93, %v100
    %v115 = vsub.f32 %v94, %v101
    %v116 = vsub.f32 %v95, %v102
    %v117 = vsub.f32 %v96, %v103
    %v118 = vsub.f32 %v97, %v104
    %v119 = vadd.f32 %v112, 1e-06
    %v120 = vadd.f32 %v113, 1e-06
    %v121 = vadd.f32 %v114, 1e-06
    %v122 = vadd.f32 %v115, 1e-06
    %v123 = vadd.f32 %v116, 1e-06
    %v124 = vadd.f32 %v117, 1e-06
    %v125 = vadd.f32 %v118, 1e-06
    %v126 = vmul.f32 %v119, %v119
    %v127 = vmul.f32 %v120, %v120
    %v128 = vmul.f32 %v121, %v121
    %v129 = vmul.f32 %v122, %v122
    %v130 = vmul.f32 %v123, %v123
    %v131 = vmul.f32 %v124, %v124
    %v132 = vmul.f32 %v125, %v125
    %133 = vadd.xlane.f32.xlu0 %v126
    %v134 = vpop.xlane.xlu0 %133
    %135 = vadd.xlane.f32.xlu0 %v127
    %v136 = vpop.xlane.xlu0 %135
    %137 = vadd.xlane.f32.xlu0 %v128
    %v138 = vpop.xlane.xlu0 %137
    %139 = vadd.xlane.f32.xlu0 %v129
    %v140 = vpop.xlane.xlu0 %139
    %141 = vadd.xlane.f32.xlu0 %v130
    %v142 = vpop.xlane.xlu0 %141
    %143 = vadd.xlane.f32.xlu0 %v131
    %v144 = vpop.xlane.xlu0 %143
    %vm145 = vcmask 1041408
    %v146 = vsel %vm145, %v132, 0.0
    %147 = vadd.xlane.f32.xlu0 %v146
    %v148 = vpop.xlane.xlu0 %147
    %v149 = vrsqrt.pop %v134
    %v150 = vmul.f32 %v134, %v149
    %vm151 = vcmp.eq.f32.partialorder %v134, inf
    %v152 = vsel %vm151, %v134, %v150
    %vm153 = vcmp.eq.f32.partialorder %v134, 0.0
    %v154 = vand.u32 %v134, 2147483648
    %v155 = vsel %vm153, %v154, %v152
    %v156 = vrsqrt.pop %v136
    %v157 = vmul.f32 %v136, %v156
    %vm158 = vcmp.eq.f32.partialorder %v136, inf
    %v159 = vsel %vm158, %v136, %v157
    %vm160 = vcmp.eq.f32.partialorder %v136, 0.0
    %v161 = vand.u32 %v136, 2147483648
    %v162 = vsel %vm160, %v161, %v159
    %v163 = vrsqrt.pop %v138
    %v164 = vmul.f32 %v138, %v163
    %vm165 = vcmp.eq.f32.partialorder %v138, inf
    %v166 = vsel %vm165, %v138, %v164
    %vm167 = vcmp.eq.f32.partialorder %v138, 0.0
    %v168 = vand.u32 %v138, 2147483648
    %v169 = vsel %vm167, %v168, %v166
    %v170 = vrsqrt.pop %v140
    %v171 = vmul.f32 %v140, %v170
    %vm172 = vcmp.eq.f32.partialorder %v140, inf
    %v173 = vsel %vm172, %v140, %v171
    %vm174 = vcmp.eq.f32.partialorder %v140, 0.0
    %v175 = vand.u32 %v140, 2147483648
    %v176 = vsel %vm174, %v175, %v173
    %v177 = vrsqrt.pop %v142
    %v178 = vmul.f32 %v142, %v177
    %vm179 = vcmp.eq.f32.partialorder %v142, inf
    %v180 = vsel %vm179, %v142, %v178
    %vm181 = vcmp.eq.f32.partialorder %v142, 0.0
    %v182 = vand.u32 %v142, 2147483648
    %v183 = vsel %vm181, %v182, %v180
    %v184 = vrsqrt.pop %v144
    %v185 = vmul.f32 %v144, %v184
    %vm186 = vcmp.eq.f32.partialorder %v144, inf
    %v187 = vsel %vm186, %v144, %v185
    %vm188 = vcmp.eq.f32.partialorder %v144, 0.0
    %v189 = vand.u32 %v144, 2147483648
    %v190 = vsel %vm188, %v189, %v187
    %v191 = vrsqrt.pop %v148
    %v192 = vmul.f32 %v148, %v191
    %vm193 = vcmp.eq.f32.partialorder %v148, inf
    %v194 = vsel %vm193, %v148, %v192
    %vm195 = vcmp.eq.f32.partialorder %v148, 0.0
    %v196 = vand.u32 %v148, 2147483648
    %v197 = vsel %vm195, %v196, %v194
    %v198 = vsub.f32 10.0, %v155
    %v199 = vsub.f32 10.0, %v162
    %v200 = vsub.f32 10.0, %v169
    %v201 = vsub.f32 10.0, %v176
    %v202 = vsub.f32 10.0, %v183
    %v203 = vsub.f32 10.0, %v190
    %v204 = vsub.f32 10.0, %v197
    %v205 = vmax.f32 %v198, 0.0
    %v206 = vmax.f32 %v199, 0.0
    %v207 = vmax.f32 %v200, 0.0
    %v208 = vmax.f32 %v201, 0.0
    %v209 = vmax.f32 %v202, 0.0
    %v210 = vmax.f32 %v203, 0.0
    %v211 = vmax.f32 %v204, 0.0
    %v212 = vmul.f32 %v105, %v134
    %v213 = vmul.f32 %v106, %v136
    %v214 = vmul.f32 %v107, %v138
    %v215 = vmul.f32 %v108, %v140
    %v216 = vmul.f32 %v109, %v142
    %v217 = vmul.f32 %v110, %v144
    %v218 = vmul.f32 %v111, %v148
    %v219 = vsub.f32 1.0, %v105
    %v220 = vsub.f32 1.0, %v106
    %v221 = vsub.f32 1.0, %v107
    %v222 = vsub.f32 1.0, %v108
    %v223 = vsub.f32 1.0, %v109
    %v224 = vsub.f32 1.0, %v110
    %v225 = vsub.f32 1.0, %v111
    %v226 = vmul.f32 %v205, %v205
    %v227 = vmul.f32 %v206, %v206
    %v228 = vmul.f32 %v207, %v207
    %v229 = vmul.f32 %v208, %v208
    %v230 = vmul.f32 %v209, %v209
    %v231 = vmul.f32 %v210, %v210
    %v232 = vmul.f32 %v211, %v211
    %v233 = vmul.f32 %v219, %v226
    %v234 = vmul.f32 %v220, %v227
    %v235 = vmul.f32 %v221, %v228
    %v236 = vmul.f32 %v222, %v229
    %v237 = vmul.f32 %v223, %v230
    %v238 = vmul.f32 %v224, %v231
    %v239 = vmul.f32 %v225, %v232
    %v240 = vadd.f32 %v212, %v233
    %v241 = vadd.f32 %v213, %v234
    %v242 = vadd.f32 %v214, %v235
    %v243 = vadd.f32 %v215, %v236
    %v244 = vadd.f32 %v216, %v237
    %v245 = vadd.f32 %v217, %v238
    %v246 = vadd.f32 %v218, %v239
    %v247 = vld [vmem:[%s3] sm:$0xff]
    %v248 = vld [vmem:[%s3 + $0x8] sm:$0xff]
    %v249 = vld [vmem:[%s3 + $0x10] sm:$0xff]
    %v250 = vld [vmem:[%s3 + $0x18] sm:$0xff]
    %v251 = vld [vmem:[%s3 + $0x20] sm:$0xff]
    %v252 = vld [vmem:[%s3 + $0x28] sm:$0xff]
    %v253 = vld [vmem:[%s3 + $0x30] sm:$0x3]
    %v254 = vadd.f32 %v247, %v240
    %v255 = vadd.f32 %v248, %v241
    %v256 = vadd.f32 %v249, %v242
    %v257 = vadd.f32 %v250, %v243
    %v258 = vadd.f32 %v251, %v244
    %v259 = vadd.f32 %v252, %v245
    %v260 = vadd.f32 %v253, %v246
    %vm261 = vcmask 7168
    %262 = vst.msk [vmem:[%s3] sm:$0xff] %vm261, %v254
    %263 = vst.msk [vmem:[%s3 + $0x8] sm:$0xff] %vm261, %v255
    %264 = vst.msk [vmem:[%s3 + $0x10] sm:$0xff] %vm261, %v256
    %265 = vst.msk [vmem:[%s3 + $0x18] sm:$0xff] %vm261, %v257
    %266 = vst.msk [vmem:[%s3 + $0x20] sm:$0xff] %vm261, %v258
    %267 = vst.msk [vmem:[%s3 + $0x28] sm:$0xff] %vm261, %v259
    %vm268 = vcmask 1024
    %269 = vst.msk [vmem:[%s3 + $0x30] sm:$0x3] %vm268, %v260
    // Predicated region
    $region22: #{tpu_custom_call.1} parent=1 // pred_check
      _
    $region23: #{tpu_custom_call.1} parent=1 // pred_check_branch
      %271 = sbr.rel (0) target = $region25
    $region24: #{tpu_custom_call.1} parent=1 // pred_region
      _
    $region25: #{tpu_custom_call.1} parent=1 // pred_fallthru
      _
    // Predicated region
    $region26: #{tpu_custom_call.1} parent=1 // pred_check
      _
    $region27: #{tpu_custom_call.1} parent=1 // pred_check_branch
      %273 = sbr.rel (0) target = $region29
    $region28: #{tpu_custom_call.1} parent=1 // pred_region
      _
    $region29: #{tpu_custom_call.1} parent=1 // pred_fallthru
      _
    %274 = vsyncpa [#allocation3], 1

</llo_original>
